<compile_context>
chip_gen: v6e
topology: v6e:2x2x1
jax: 0.10.0
libtpu: 0.0.40
codegen_flags: <defaults>
</compile_context>

<pallas_src>
import functools

import jax
import jax.numpy as jnp
from jax.experimental import pallas as pl
from jax.experimental.pallas import tpu as pltpu


def _round_up(x, m):
    return (x + m - 1) // m * m


def _vmem_capacity_bytes():
    """Physical VMEM per TensorCore; conservative 64 MiB fallback (v7x-safe)."""
    try:
        cap = int(getattr(pltpu.get_tpu_info(), "vmem_capacity_bytes", 0))
        if cap > 0:
            return cap
    except Exception:
        pass
    return 64 * 1024 * 1024


def _block_diag(w, k):
    """k copies of w on the diagonal: (k*din, k*dout)."""
    if k == 1:
        return w
    din, dout = w.shape
    eye = jnp.eye(k, dtype=w.dtype)
    return jnp.einsum("ij,ab->aibj", w, eye).reshape(k * din, k * dout)


def _mlp_kernel(x_ref, w1_ref, b1_ref, w2_ref, b2_ref, o_ref):
    # x: (tile, k*d), w1: (k*d, k*h), b1: (1, k*h), w2: (k*h, k*o), b2: (1, k*o)
    h = jnp.dot(x_ref[...], w1_ref[...], preferred_element_type=jnp.float32)
    h = jnp.maximum(h + b1_ref[...], 0.0)                      # ReLU
    y = jnp.dot(h, w2_ref[...], preferred_element_type=jnp.float32)
    y = jnp.maximum(y + b2_ref[...], 0.0)                      # ReLU
    o_ref[...] = y.astype(o_ref.dtype)


@functools.partial(jax.jit, static_argnames=("tile_rows",))
def net_forward(x, w1, b1, w2, b2, *, tile_rows=None):
    """Forward pass of Net.  x: (N, ...); weights stored as (in, out)."""
    n = x.shape[0]
    x2 = x.reshape(n, -1).astype(jnp.float32)          # x.view(x.size(0), -1)
    d = x2.shape[1]
    h = w1.shape[1]
    o = w2.shape[1]

    # ---- Lane packing: fold k batch rows into one (up to) 128-lane packed row. ----
    k = max(1, 128 // d) if d < 128 else 1
    dp, hp, op = k * d, k * h, k * o

    # Pad batch only to a multiple of 8*k (<= 8*k-1 zero rows; no-op for typical
    # batches).  Zero rows compute relu(relu(b1)@w2 + b2) junk and are sliced off.
    np_full = _round_up(max(n, 1), 8 * k)
    if np_full != n:
        x2 = jnp.pad(x2, ((0, np_full - n), (0, 0)))
    rows_packed = np_full // k
    xp = x2.reshape(rows_packed, dp)                   # contiguous -> no data movement

    w1p = _block_diag(w1, k)                           # (k*d, k*h)
    w2p = _block_diag(w2, k)                           # (k*h, k*o)
    b1p = jnp.tile(b1.reshape(1, h), (1, k))           # (1, k*h)
    b2p = jnp.tile(b2.reshape(1, o), (1, k))           # (1, k*o)

    # ---- Tile-size selection (in packed-row units). ----
    lanes_x = _round_up(dp, 128)                       # VMEM blocks are (8,128)-tiled
    lanes_h = _round_up(hp, 128)
    lanes_o = _round_up(op, 128)
    vmem_cap = _vmem_capacity_bytes()
    vmem_limit = vmem_cap * 3 // 4                     # ~48 MiB v7x / ~96 MiB v5e-v6e
    tile_budget = vmem_limit * 85 // 100               # headroom for weights/scratch
    # Per packed row: double-buffered x block + double-buffered out block + f32
    # intermediates, all counted at their lane-padded width.
    bytes_per_row = 4 * (2 * lanes_x + 2 * lanes_o + 2 * lanes_h)

    if tile_rows is None:
        rows_by_vmem = max(8, (tile_budget // bytes_per_row) // 8 * 8)
        target_step_bytes = 8 * 1024 * 1024            # ~8 MB of x HBM read per step
        rows_by_target = max(8, (target_step_bytes // (dp * 4)) // 8 * 8)
        tile_rows = min(rows_packed, rows_by_vmem, rows_by_target)
        # Keep >= 2 grid steps for large batches so the "parallel" batch axis can
        # be sharded across both v7x TensorCores (no effect on v5e/v6e).
        if rows_packed >= 2048:
            tile_rows = min(tile_rows, _round_up(pl.cdiv(rows_packed, 2), 8))
    tile_rows = max(8, _round_up(tile_rows, 8))

    grid = (pl.cdiv(rows_packed, tile_rows),)          # ragged last block allowed

    out_p = pl.pallas_call(
        _mlp_kernel,
        out_shape=jax.ShapeDtypeStruct((rows_packed, op), jnp.float32),
        grid=grid,
        in_specs=[
            pl.BlockSpec((tile_rows, dp), lambda i: (i, 0)),   # x: moves with grid
            pl.BlockSpec((dp, hp), lambda i: (0, 0)),          # w1: VMEM-resident
            pl.BlockSpec((1, hp), lambda i: (0, 0)),           # b1
            pl.BlockSpec((hp, op), lambda i: (0, 0)),          # w2
            pl.BlockSpec((1, op), lambda i: (0, 0)),           # b2
        ],
        out_specs=pl.BlockSpec((tile_rows, op), lambda i: (i, 0)),
        compiler_params=pltpu.CompilerParams(
            dimension_semantics=("parallel",),
            vmem_limit_bytes=int(vmem_limit)),
    )(xp, w1p, b1p, w2p, b2p)

    out = out_p.reshape(np_full, o)                    # contiguous -> no data movement
    return out if np_full == n else out[:n, :]


def init_params(key, attr_count, hidden=10, out=2):
    """Deterministic init mirroring PyTorch nn.Linear (uniform +/- 1/sqrt(fan_in)).

    Weights stored as (in, out) so the kernel does x @ W + b.
    """
    k1, k2, k3, k4 = jax.random.split(key, 4)
    bound1 = 1.0 / jnp.sqrt(attr_count)
    bound2 = 1.0 / jnp.sqrt(hidden)
    w1 = jax.random.uniform(k1, (attr_count, hidden), jnp.float32, -bound1, bound1)
    b1 = jax.random.uniform(k2, (hidden,), jnp.float32, -bound1, bound1)
    w2 = jax.random.uniform(k3, (hidden, out), jnp.float32, -bound2, bound2)
    b2 = jax.random.uniform(k4, (out,), jnp.float32, -bound2, bound2)
    return w1, b1, w2, b2


if __name__ == "__main__":
    key = jax.random.PRNGKey(0)
    kx, kp = jax.random.split(key)

    # attr_count = 16; x is 4-D so the forward's view() flattens trailing dims.
    batch, attr_count = 2, 16
    x = jax.random.normal(kx, (batch, 4, 2, 2), jnp.float32)
    w1, b1, w2, b2 = init_params(kp, attr_count)

    def ref_fn(xin):
        xf = xin.reshape(xin.shape[0], -1)
        return jnp.maximum(jnp.maximum(xf @ w1 + b1, 0.0) @ w2 + b2, 0.0)

    out = jax.block_until_ready(net_forward(x, w1, b1, w2, b2))
    assert out.shape == (batch, 2)
    assert jnp.allclose(out, ref_fn(x), atol=1e-5, rtol=1e-5)

    # Multi-tile path with a ragged last block: 300 rows -> 40 packed rows,
    # tile of 16 packed rows -> grid of 3 with a partial final block.
    x_big = jax.random.normal(kx, (300, attr_count), jnp.float32)
    out_big = jax.block_until_ready(net_forward(x_big, w1, b1, w2, b2, tile_rows=16))
    assert out_big.shape == (300, 2)
    assert jnp.allclose(out_big, ref_fn(x_big), atol=1e-5, rtol=1e-5)

    print("KERNEL_OK")
</pallas_src>

<mosaic_0001>
module attributes {stable_mosaic.version = 11 : i64} {
  func.func @_mlp_kernel(%arg0: i32, %arg1: memref<8x128xf32, #tpu.memory_space<vmem>>, %arg2: memref<128x80xf32, #tpu.memory_space<vmem>>, %arg3: memref<1x80xf32, #tpu.memory_space<vmem>>, %arg4: memref<80x16xf32, #tpu.memory_space<vmem>>, %arg5: memref<1x16xf32, #tpu.memory_space<vmem>>, %arg6: memref<8x16xf32, #tpu.memory_space<vmem>>) attributes {dimension_semantics = [#tpu.dimension_semantics<parallel>], iteration_bounds = array<i64: 1>, scalar_prefetch = 0 : i64, scratch_operands = 0 : i64, tpu.core_type = #tpu.core_type<tc>, window_params = [{transform_indices = @transform_0, window_bounds = array<i64: 8, 128>}, {pipeline_mode = #tpu.pipeline_mode<synchronous>, transform_indices = @transform_1, window_bounds = array<i64: 128, 80>}, {pipeline_mode = #tpu.pipeline_mode<synchronous>, transform_indices = @transform_2, window_bounds = array<i64: 1, 80>}, {pipeline_mode = #tpu.pipeline_mode<synchronous>, transform_indices = @transform_3, window_bounds = array<i64: 80, 16>}, {pipeline_mode = #tpu.pipeline_mode<synchronous>, transform_indices = @transform_4, window_bounds = array<i64: 1, 16>}, {transform_indices = @transform_5, window_bounds = array<i64: 8, 16>}]} {
    %c0 = arith.constant 0 : index
    %c0_0 = arith.constant 0 : index
    %0 = vector.load %arg1[%c0, %c0_0] : memref<8x128xf32, #tpu.memory_space<vmem>>, vector<8x128xf32>
    %c0_1 = arith.constant 0 : index
    %c0_2 = arith.constant 0 : index
    %1 = vector.load %arg2[%c0_1, %c0_2] : memref<128x80xf32, #tpu.memory_space<vmem>>, vector<128x80xf32>
    %cst = arith.constant dense<0.000000e+00> : vector<8x80xf32>
    %2 = tpu.matmul %0, %1, %cst {dimension_numbers = #tpu.dot_dimension_numbers<[1], [0], [0], [1], [0, 0, 1, 1], [], []>} : vector<8x128xf32>, vector<128x80xf32>, vector<8x80xf32> -> vector<8x80xf32>
    %c0_3 = arith.constant 0 : index
    %c0_4 = arith.constant 0 : index
    %3 = vector.load %arg3[%c0_3, %c0_4] : memref<1x80xf32, #tpu.memory_space<vmem>>, vector<1x80xf32>
    %4 = vector.broadcast %3 : vector<1x80xf32> to vector<8x80xf32>
    %5 = arith.addf %2, %4 : vector<8x80xf32>
    %cst_5 = arith.constant 0.000000e+00 : f32
    %6 = vector.broadcast %cst_5 : f32 to vector<8x80xf32>
    %7 = arith.maximumf %5, %6 : vector<8x80xf32>
    %c0_6 = arith.constant 0 : index
    %c0_7 = arith.constant 0 : index
    %8 = vector.load %arg4[%c0_6, %c0_7] : memref<80x16xf32, #tpu.memory_space<vmem>>, vector<80x16xf32>
    %cst_8 = arith.constant dense<0.000000e+00> : vector<8x16xf32>
    %9 = tpu.matmul %7, %8, %cst_8 {dimension_numbers = #tpu.dot_dimension_numbers<[1], [0], [0], [1], [0, 0, 1, 1], [], []>} : vector<8x80xf32>, vector<80x16xf32>, vector<8x16xf32> -> vector<8x16xf32>
    %c0_9 = arith.constant 0 : index
    %c0_10 = arith.constant 0 : index
    %10 = vector.load %arg5[%c0_9, %c0_10] : memref<1x16xf32, #tpu.memory_space<vmem>>, vector<1x16xf32>
    %11 = vector.broadcast %10 : vector<1x16xf32> to vector<8x16xf32>
    %12 = arith.addf %9, %11 : vector<8x16xf32>
    %cst_11 = arith.constant 0.000000e+00 : f32
    %13 = vector.broadcast %cst_11 : f32 to vector<8x16xf32>
    %14 = arith.maximumf %12, %13 : vector<8x16xf32>
    %c0_12 = arith.constant 0 : index
    %c0_13 = arith.constant 0 : index
    %15 = vector.load %arg6[%c0_12, %c0_13] : memref<8x16xf32, #tpu.memory_space<vmem>>, vector<8x16xf32>
    tpu.vector_store %arg6[%c0_12, %c0_13], %14 {strides = array<i32>} : memref<8x16xf32, #tpu.memory_space<vmem>>, vector<8x16xf32>,
    return
  }
  func.func @transform_0(%arg0: i32) -> (i32, i32) {
    %c0_i32 = arith.constant 0 : i32
    %c0_i32_0 = arith.constant 0 : i32
    return %arg0, %c0_i32 : i32, i32
  }
  func.func @transform_1(%arg0: i32) -> (i32, i32) {
    %c0_i32 = arith.constant 0 : i32
    %c0_i32_0 = arith.constant 0 : i32
    %c0_i32_1 = arith.constant 0 : i32
    return %c0_i32, %c0_i32_0 : i32, i32
  }
  func.func @transform_2(%arg0: i32) -> (i32, i32) {
    %c0_i32 = arith.constant 0 : i32
    %c0_i32_0 = arith.constant 0 : i32
    %c0_i32_1 = arith.constant 0 : i32
    return %c0_i32, %c0_i32_0 : i32, i32
  }
  func.func @transform_3(%arg0: i32) -> (i32, i32) {
    %c0_i32 = arith.constant 0 : i32
    %c0_i32_0 = arith.constant 0 : i32
    %c0_i32_1 = arith.constant 0 : i32
    return %c0_i32, %c0_i32_0 : i32, i32
  }
  func.func @transform_4(%arg0: i32) -> (i32, i32) {
    %c0_i32 = arith.constant 0 : i32
    %c0_i32_0 = arith.constant 0 : i32
    %c0_i32_1 = arith.constant 0 : i32
    return %c0_i32, %c0_i32_0 : i32, i32
  }
  func.func @transform_5(%arg0: i32) -> (i32, i32) {
    %c0_i32 = arith.constant 0 : i32
    %c0_i32_0 = arith.constant 0 : i32
    return %arg0, %c0_i32 : i32, i32
  }
}

</mosaic_0001>

<llo_original>
// kernel: net_forward.1
$region0: #{net_forward.1}
  #allocation0 [shape = 'u32[]', space=smem, size = 0x4, offset = 0x4, fixed_abs, tag = 'smem constant byte address 0x4 - core index']
  #allocation1 [shape = 'u32[144,128]{1,0:T(1,128)}', space=vmem, size = 0x12000, scoped, tag = 'internal scratch']
  %s0 = inlined_call_operand.vmem [shape: f32[8,128], index: 0, kind: input, shape index: {}]
  %s1 = inlined_call_operand.vmem [shape: f32[128,80], index: 1, kind: input, shape index: {}]
  %s2 = inlined_call_operand.vmem [shape: f32[1,80], index: 2, kind: input, shape index: {}]
  %s3 = inlined_call_operand.vmem [shape: f32[80,16], index: 3, kind: input, shape index: {}]
  %s4 = inlined_call_operand.vmem [shape: f32[1,16], index: 4, kind: input, shape index: {}]
  %s5 = inlined_call_operand.vmem [shape: f32[8,16], index: 5, kind: output, shape index: {}]
  %s6 = sld [smem:[#allocation0]]
  $region30: #{net_forward.1} parent=0
    _
  %s8 = ssub.s32 1, %s6
  %s9 = scalar_select 0, %s8, %s6
  // Predicated region
  $region2: #{net_forward.1} parent=0 // pred_check
    _
  $region3: #{net_forward.1} parent=0 // pred_check_branch
    %11 = sbr.rel (0) target = $region5
  $region4: #{net_forward.1} parent=0 // pred_region
    _
  $region5: #{net_forward.1} parent=0 // pred_fallthru
    _
  // Predicated region
  $region6: #{net_forward.1} parent=0 // pred_check
    _
  $region7: #{net_forward.1} parent=0 // pred_check_branch
    %13 = sbr.rel (0) target = $region9
  $region8: #{net_forward.1} parent=0 // pred_region
    _
  $region9: #{net_forward.1} parent=0 // pred_fallthru
    _
  // Predicated region
  $region10: #{net_forward.1} parent=0 // pred_check
    _
  $region11: #{net_forward.1} parent=0 // pred_check_branch
    %15 = sbr.rel (0) target = $region13
  $region12: #{net_forward.1} parent=0 // pred_region
    _
  $region13: #{net_forward.1} parent=0 // pred_fallthru
    _
  // Predicated region
  $region14: #{net_forward.1} parent=0 // pred_check
    _
  $region15: #{net_forward.1} parent=0 // pred_check_branch
    %17 = sbr.rel (0) target = $region17
  $region16: #{net_forward.1} parent=0 // pred_region
    _
  $region17: #{net_forward.1} parent=0 // pred_fallthru
    _
  // Predicated region
  $region18: #{net_forward.1} parent=0 // pred_check
    _
  $region19: #{net_forward.1} parent=0 // pred_check_branch
    %19 = sbr.rel (0) target = $region21
  $region20: #{net_forward.1} parent=0 // pred_region
    _
  $region21: #{net_forward.1} parent=0 // pred_fallthru
    _
  %v20 = vld [vmem:[%s0] sm:$0xff]
  %v21 = vld [vmem:[%s1] sm:$0xff]
  %v22 = vld [vmem:[%s1 + $0x8] sm:$0xff]
  %v23 = vld [vmem:[%s1 + $0x10] sm:$0xff]
  %v24 = vld [vmem:[%s1 + $0x18] sm:$0xff]
  %v25 = vld [vmem:[%s1 + $0x20] sm:$0xff]
  %v26 = vld [vmem:[%s1 + $0x28] sm:$0xff]
  %v27 = vld [vmem:[%s1 + $0x30] sm:$0xff]
  %v28 = vld [vmem:[%s1 + $0x38] sm:$0xff]
  %v29 = vld [vmem:[%s1 + $0x40] sm:$0xff]
  %v30 = vld [vmem:[%s1 + $0x48] sm:$0xff]
  %v31 = vld [vmem:[%s1 + $0x50] sm:$0xff]
  %v32 = vld [vmem:[%s1 + $0x58] sm:$0xff]
  %v33 = vld [vmem:[%s1 + $0x60] sm:$0xff]
  %v34 = vld [vmem:[%s1 + $0x68] sm:$0xff]
  %v35 = vld [vmem:[%s1 + $0x70] sm:$0xff]
  %v36 = vld [vmem:[%s1 + $0x78] sm:$0xff]
  %v37 = vld [vmem:[%s2] sm:$0x1]
  %v39 = vlaneseq
  %v40 = vshrl.u32 %v39, 7
  %v41 = vsub.s32 0, %v40
  %v42 = vrot.slane %v37, %v41
  %44 = vmatprep.subr.mxu0 0.0
  %45 = vmatpush1.msra.mxu0 %v36
  %46 = vmatprep.subr.mxu0 0.0
  %47 = vmatpush1.msra.mxu0 %v35
  %48 = vmatprep.subr.mxu0 0.0
  %49 = vmatpush1.msra.mxu0 %v34
  %50 = vmatprep.subr.mxu0 0.0
  %51 = vmatpush1.msra.mxu0 %v33
  %52 = vmatprep.subr.mxu0 0.0
  %53 = vmatpush1.msra.mxu0 %v32
  %54 = vmatprep.subr.mxu0 0.0
  %55 = vmatpush1.msra.mxu0 %v31
  %56 = vmatprep.subr.mxu0 0.0
  %57 = vmatpush1.msra.mxu0 %v30
  %58 = vmatprep.subr.mxu0 0.0
  %59 = vmatpush1.msra.mxu0 %v29
  %60 = vmatprep.subr.mxu0 0.0
  %61 = vmatpush1.msra.mxu0 %v28
  %62 = vmatprep.subr.mxu0 0.0
  %63 = vmatpush1.msra.mxu0 %v27
  %64 = vmatprep.subr.mxu0 0.0
  %65 = vmatpush1.msra.mxu0 %v26
  %66 = vmatprep.subr.mxu0 0.0
  %67 = vmatpush1.msra.mxu0 %v25
  %68 = vmatprep.subr.mxu0 0.0
  %69 = vmatpush1.msra.mxu0 %v24
  %70 = vmatprep.subr.mxu0 0.0
  %71 = vmatpush1.msra.mxu0 %v23
  %72 = vmatprep.subr.mxu0 0.0
  %73 = vmatpush1.msra.mxu0 %v22
  %74 = vmatprep.subr.mxu0 0.0
  %75 = vmatpush1.msra.mxu0 %v21
  %76 = vmatprep.subr.mxu0 0.0
  %77 = vmatpush2.msra.mxu0 0.0
  %78 = vmatprep.subr.mxu0 0.0
  %79 = vmatpush2.msra.mxu0 0.0
  %80 = vmatprep.subr.mxu0 0.0
  %81 = vmatpush2.msra.mxu0 0.0
  %82 = vmatprep.subr.mxu0 0.0
  %83 = vmatpush2.msra.mxu0 0.0
  %84 = vmatprep.subr.mxu0 0.0
  %85 = vmatpush2.msra.mxu0 0.0
  %86 = vmatprep.subr.mxu0 0.0
  %87 = vmatpush2.msra.mxu0 0.0
  %88 = vmatprep.subr.mxu0 0.0
  %89 = vmatpush2.msra.mxu0 0.0
  %90 = vmatprep.subr.mxu0 0.0
  %91 = vmatpush2.msra.mxu0 0.0
  %92 = vmatprep.subr.mxu0 0.0
  %93 = vmatpush2.msra.mxu0 0.0
  %94 = vmatprep.subr.mxu0 0.0
  %95 = vmatpush2.msra.mxu0 0.0
  %96 = vmatprep.subr.mxu0 0.0
  %97 = vmatpush2.msra.mxu0 0.0
  %98 = vmatprep.subr.mxu0 0.0
  %99 = vmatpush2.msra.mxu0 0.0
  %100 = vmatprep.subr.mxu0 0.0
  %101 = vmatpush2.msra.mxu0 0.0
  %102 = vmatprep.subr.mxu0 0.0
  %103 = vmatpush2.msra.mxu0 0.0
  %104 = vmatprep.subr.mxu0 0.0
  %105 = vmatpush2.msra.mxu0 0.0
  %106 = vmatprep.subr.mxu0 0.0
  %107 = vmatpush2.msra.mxu0 0.0
  %108 = vmatprep.mubr.f32.mxu0 0.0
  %109 = vmatmul.mubr.f32.gmra.mxu0 %v20
  %v110 = vpop.f32.mrf.mxu0
  %v111 = vadd.f32 %v42, %v110
  %v112 = vpop.f32.mrf.mxu0
  %113 = vdwg.mxu0
  %v114 = vmax.f32 %v111, 0.0
  %v115 = vld [vmem:[%s3] sm:$0xff]
  %v116 = vld [vmem:[%s3 + $0x8] sm:$0xff]
  %v117 = vld [vmem:[%s3 + $0x10] sm:$0xff]
  %v118 = vld [vmem:[%s3 + $0x18] sm:$0xff]
  %v119 = vld [vmem:[%s3 + $0x20] sm:$0xff]
  %v120 = vld [vmem:[%s3 + $0x28] sm:$0xff]
  %v121 = vld [vmem:[%s3 + $0x30] sm:$0xff]
  %v122 = vld [vmem:[%s3 + $0x38] sm:$0xff]
  %v123 = vld [vmem:[%s3 + $0x40] sm:$0xff]
  %v124 = vld [vmem:[%s3 + $0x48] sm:$0xff]
  %v125 = vld [vmem:[%s4] sm:$0x1]
  %v127 = vlaneseq
  %v128 = vshrl.u32 %v127, 7
  %v129 = vsub.s32 0, %v128
  %v130 = vrot.slane %v125, %v129
  %vm132 = vcmask 654336
  %v134 = vsel %vm132, %v114, 0
  %136 = vmatprep.subr.mxu0 0.0
  %137 = vmatpush1.msra.mxu0 0.0
  %138 = vmatprep.subr.mxu0 0.0
  %139 = vmatpush1.msra.mxu0 0.0
  %140 = vmatprep.subr.mxu0 0.0
  %141 = vmatpush1.msra.mxu0 0.0
  %142 = vmatprep.subr.mxu0 0.0
  %143 = vmatpush1.msra.mxu0 0.0
  %144 = vmatprep.subr.mxu0 0.0
  %145 = vmatpush1.msra.mxu0 0.0
  %146 = vmatprep.subr.mxu0 0.0
  %147 = vmatpush1.msra.mxu0 0.0
  %148 = vmatprep.subr.mxu0 0.0
  %149 = vmatpush1.msra.mxu0 %v124
  %150 = vmatprep.subr.mxu0 0.0
  %151 = vmatpush1.msra.mxu0 %v123
  %152 = vmatprep.subr.mxu0 0.0
  %153 = vmatpush1.msra.mxu0 %v122
  %154 = vmatprep.subr.mxu0 0.0
  %155 = vmatpush1.msra.mxu0 %v121
  %156 = vmatprep.subr.mxu0 0.0
  %157 = vmatpush1.msra.mxu0 %v120
  %158 = vmatprep.subr.mxu0 0.0
  %159 = vmatpush1.msra.mxu0 %v119
  %160 = vmatprep.subr.mxu0 0.0
  %161 = vmatpush1.msra.mxu0 %v118
  %162 = vmatprep.subr.mxu0 0.0
  %163 = vmatpush1.msra.mxu0 %v117
  %164 = vmatprep.subr.mxu0 0.0
  %165 = vmatpush1.msra.mxu0 %v116
  %166 = vmatprep.subr.mxu0 0.0
  %167 = vmatpush1.msra.mxu0 %v115
  %168 = vmatprep.subr.mxu0 0.0
  %169 = vmatpush2.msra.mxu0 0.0
  %170 = vmatprep.subr.mxu0 0.0
  %171 = vmatpush2.msra.mxu0 0.0
  %172 = vmatprep.subr.mxu0 0.0
  %173 = vmatpush2.msra.mxu0 0.0
  %174 = vmatprep.subr.mxu0 0.0
  %175 = vmatpush2.msra.mxu0 0.0
  %176 = vmatprep.subr.mxu0 0.0
  %177 = vmatpush2.msra.mxu0 0.0
  %178 = vmatprep.subr.mxu0 0.0
  %179 = vmatpush2.msra.mxu0 0.0
  %180 = vmatprep.subr.mxu0 0.0
  %181 = vmatpush2.msra.mxu0 0.0
  %182 = vmatprep.subr.mxu0 0.0
  %183 = vmatpush2.msra.mxu0 0.0
  %184 = vmatprep.subr.mxu0 0.0
  %185 = vmatpush2.msra.mxu0 0.0
  %186 = vmatprep.subr.mxu0 0.0
  %187 = vmatpush2.msra.mxu0 0.0
  %188 = vmatprep.subr.mxu0 0.0
  %189 = vmatpush2.msra.mxu0 0.0
  %190 = vmatprep.subr.mxu0 0.0
  %191 = vmatpush2.msra.mxu0 0.0
  %192 = vmatprep.subr.mxu0 0.0
  %193 = vmatpush2.msra.mxu0 0.0
  %194 = vmatprep.subr.mxu0 0.0
  %195 = vmatpush2.msra.mxu0 0.0
  %196 = vmatprep.subr.mxu0 0.0
  %197 = vmatpush2.msra.mxu0 0.0
  %198 = vmatprep.subr.mxu0 0.0
  %199 = vmatpush2.msra.mxu0 0.0
  %200 = vmatprep.mubr.f32.mxu0 0.0
  %201 = vmatmul.mubr.f32.gmra.mxu0 %v134
  %v202 = vpop.f32.mrf.mxu0
  %v203 = vadd.f32 %v130, %v202
  %v204 = vpop.f32.mrf.mxu0
  %205 = vdwg.mxu0
  %v206 = vmax.f32 %v203, 0.0
  %vm207 = vcmask 130048
  %208 = vst.msk [vmem:[%s5] sm:$0xff] %vm207, %v206
  // Predicated region
  $region22: #{net_forward.1} parent=0 // pred_check
    _
  $region23: #{net_forward.1} parent=0 // pred_check_branch
    %210 = sbr.rel (0) target = $region25
  $region24: #{net_forward.1} parent=0 // pred_region
    _
  $region25: #{net_forward.1} parent=0 // pred_fallthru
    _
  // Predicated region
  $region26: #{net_forward.1} parent=0 // pred_check
    _
  $region27: #{net_forward.1} parent=0 // pred_check_branch
    %212 = sbr.rel (0) target = $region29
  $region28: #{net_forward.1} parent=0 // pred_region
    _
  $region29: #{net_forward.1} parent=0 // pred_fallthru
    _

</llo_original>
